<compile_context>
chip_gen: v7x
topology: tpu7x:2x2x1
jax: 0.10.0
libtpu: 0.0.40
codegen_flags: <defaults>
</compile_context>

<pallas_src>
import functools

import jax
import jax.numpy as jnp
from jax.experimental import pallas as pl
from jax.experimental.pallas import tpu as pltpu

_LANE = 128
_SUBLANE = 8


def _round_up(x, m):
    return ((x + m - 1) // m) * m


def _cdiv(a, b):
    return -(-a // b)


def _focal_loss_kernel(x_ref, t_ref, part_ref, *, alpha, gamma, full_rows, rem,
                       tile_rows, steps_per_core, red_ilp):
    c = pl.program_id(0)          # partial-sum slot ("parallel"; megacore on v7x)
    i = pl.program_id(1)          # reduction step ("arbitrary")

    @pl.when(i == 0)
    def _():
        part_ref[...] = jnp.zeros_like(part_ref)

    x = x_ref[...].astype(jnp.float32)
    t = t_ref[...].astype(jnp.float32)

    # z = (2t-1)*x.  BCE-with-logits = softplus(-z);  1-pt = sigmoid(-z).
    # One exp + one log (+ cheap reciprocal) per element.
    z = (2.0 * t - 1.0) * x
    e = jnp.exp(-jnp.abs(z))
    bce = jnp.log1p(e) - jnp.minimum(z, 0.0)
    inv = pl.reciprocal(1.0 + e, approx=False)
    q = jnp.where(z >= 0.0, e, 1.0) * inv          # = sigmoid(-z) = 1-pt, in [0,1]

    # alpha_table gather: t==0 -> alpha, t==1 -> 1-alpha (pure VALU arithmetic).
    at = jnp.float32(alpha) + jnp.float32(1.0 - 2.0 * alpha) * t

    if float(gamma).is_integer() and gamma >= 0:
        g = int(gamma)                             # integer gamma: repeated multiply
        focal = jnp.ones_like(q) if g == 0 else q
        for _ in range(max(g - 1, 0)):
            focal = focal * q
    else:
        focal = q ** jnp.float32(gamma)            # q >= 0 already (sigmoid output)

    f_loss = at * focal * bce

    def _accumulate(vals):
        # (tile_rows, 128) -> (8, 128): two-level reduce with `red_ilp`
        # independent accumulation chains to expose VALU ILP.
        outer = tile_rows // (_SUBLANE * red_ilp)
        r = vals.reshape(outer, red_ilp, _SUBLANE, _LANE).sum(axis=0)
        part_ref[...] += r.sum(axis=0)

    # Only tiles straddling / beyond the end of the data pay for the mask.
    row0 = (c * steps_per_core + i) * tile_rows
    tile_fully_valid = row0 + tile_rows <= full_rows

    @pl.when(tile_fully_valid)
    def _():
        _accumulate(f_loss)

    @pl.when(jnp.logical_not(tile_fully_valid))
    def _():
        rows = jax.lax.broadcasted_iota(jnp.int32, f_loss.shape, 0) + row0
        lanes = jax.lax.broadcasted_iota(jnp.int32, f_loss.shape, 1)
        # Row/lane comparison (no rows*128+lane product) -> no int32 overflow,
        # and zeroes both ragged-tail garbage and clamped re-read blocks.
        valid = (rows < full_rows) | ((rows == full_rows) & (lanes < rem))
        _accumulate(jnp.where(valid, f_loss, 0.0))


def weighted_focal_loss(inputs, targets, alpha=0.25, gamma=2.0, *,
                        block_rows=4096, num_partials=2):
    """Returns a scalar float32 loss, matching WeightedFocalLoss.forward."""
    x = jnp.asarray(inputs).reshape(-1)   # native dtype; cast to f32 inside kernel
    t = jnp.asarray(targets).reshape(-1)
    n = x.shape[0]

    rows_total = _cdiv(n, _LANE)
    full_rows, rem = divmod(n, _LANE)

    # Pad only the ragged sub-128 tail (free when n % 128 == 0); never pad to
    # whole tiles -- the in-kernel mask handles ragged / clamped blocks.
    pad = rows_total * _LANE - n
    if pad:
        x = jnp.pad(x, (0, pad))
        t = jnp.pad(t, (0, pad))
    x2 = x.reshape(rows_total, _LANE)
    t2 = t.reshape(rows_total, _LANE)

    # Tile geometry.  block_rows=4096 -> 2 MiB/f32 input tile, 8 MiB total with
    # double buffering: fits v5e's 16 MiB scoped default and v6e/v7x's 32 MiB.
    block_rows = max(_SUBLANE, _round_up(block_rows, _SUBLANE))
    num_partials = max(1, min(num_partials, _cdiv(rows_total, _SUBLANE)))
    tile_rows = min(block_rows, _round_up(_cdiv(rows_total, num_partials), _SUBLANE))
    num_blocks = _cdiv(rows_total, tile_rows)
    steps_per_core = _cdiv(num_blocks, num_partials)

    # Reduce-ILP factor: largest of {8,4,2,1} dividing tile_rows/8.
    n_groups = tile_rows // _SUBLANE
    red_ilp = next(f for f in (8, 4, 2, 1) if n_groups % f == 0)

    kernel = functools.partial(
        _focal_loss_kernel, alpha=float(alpha), gamma=float(gamma),
        full_rows=full_rows, rem=rem, tile_rows=tile_rows,
        steps_per_core=steps_per_core, red_ilp=red_ilp)

    in_map = lambda c, i: (c * steps_per_core + i, 0)
    partials = pl.pallas_call(
        kernel,
        out_shape=jax.ShapeDtypeStruct((num_partials * _SUBLANE, _LANE), jnp.float32),
        grid=(num_partials, steps_per_core),
        in_specs=[pl.BlockSpec((tile_rows, _LANE), in_map),
                  pl.BlockSpec((tile_rows, _LANE), in_map)],
        out_specs=pl.BlockSpec((_SUBLANE, _LANE), lambda c, i: (c, 0)),
        compiler_params=pltpu.CompilerParams(
            dimension_semantics=("parallel", "arbitrary")),
    )(x2, t2)

    # Tiny final combine (num_partials*8*128 floats) + mean normalization.
    return jnp.sum(partials) / jnp.float32(n)


def _reference_focal_loss(inputs, targets, alpha=0.25, gamma=2.0):
    x = jnp.asarray(inputs, jnp.float32).reshape(-1)
    t = jnp.asarray(targets, jnp.float32).reshape(-1)
    bce = jnp.maximum(x, 0.0) - x * t + jnp.log1p(jnp.exp(-jnp.abs(x)))
    at = jnp.where(t.astype(jnp.int32) == 1, 1.0 - alpha, alpha)
    pt = jnp.exp(-bce)
    return jnp.mean(at * (1.0 - pt) ** gamma * bce)


if __name__ == "__main__":
    # Small deterministic inputs consistent with the module: per-element logits
    # and binary targets of the same shape (flattened by the loss).
    key = jax.random.PRNGKey(0)
    k_x, k_t = jax.random.split(key)
    shape = (2, 4, 16, 16)                      # 2048 elements, multiple of 128
    logits = jax.random.normal(k_x, shape, dtype=jnp.float32) * 2.0
    targets = jax.random.bernoulli(k_t, p=0.3, shape=shape).astype(jnp.float32)

    loss = jax.block_until_ready(weighted_focal_loss(logits, targets, 0.25, 2.0))
    ref = jax.block_until_ready(_reference_focal_loss(logits, targets, 0.25, 2.0))
    assert jnp.allclose(loss, ref, rtol=1e-4, atol=1e-6), (loss, ref)

    # Multi-step grid + ragged-tail sanity check (accumulator carry across the
    # "arbitrary" axis, masked boundary tile, clamped out-of-range block).
    k_x2, k_t2 = jax.random.split(jax.random.PRNGKey(1))
    N2 = 40000  # not a multiple of 128
    logits2 = jax.random.normal(k_x2, (N2,), dtype=jnp.float32) * 3.0
    targets2 = jax.random.bernoulli(k_t2, p=0.5, shape=(N2,)).astype(jnp.float32)
    loss2 = jax.block_until_ready(
        weighted_focal_loss(logits2, targets2, 0.25, 2.0, block_rows=64))
    ref2 = jax.block_until_ready(_reference_focal_loss(logits2, targets2, 0.25, 2.0))
    assert jnp.allclose(loss2, ref2, rtol=1e-4, atol=1e-6), (loss2, ref2)

    print("KERNEL_OK")
</pallas_src>

<mosaic_0001>
module attributes {stable_mosaic.version = 11 : i64} {
  func.func @_focal_loss_kernel(%arg0: i32, %arg1: i32, %arg2: memref<8x128xf32, #tpu.memory_space<vmem>>, %arg3: memref<8x128xf32, #tpu.memory_space<vmem>>, %arg4: memref<8x128xf32, #tpu.memory_space<vmem>>) attributes {dimension_semantics = [#tpu.dimension_semantics<parallel>, #tpu.dimension_semantics<arbitrary>], iteration_bounds = array<i64: 2, 1>, scalar_prefetch = 0 : i64, scratch_operands = 0 : i64, tpu.core_type = #tpu.core_type<tc>, window_params = [{transform_indices = @transform_0, window_bounds = array<i64: 8, 128>}, {transform_indices = @transform_1, window_bounds = array<i64: 8, 128>}, {transform_indices = @transform_2, window_bounds = array<i64: 8, 128>}]} {
    %c0_i32 = arith.constant 0 : i32
    %0 = arith.cmpi eq, %arg1, %c0_i32 : i32
    %1 = arith.extui %0 : i1 to i32
    %c0_i32_0 = arith.constant 0 : i32
    %2 = arith.cmpi ne, %1, %c0_i32_0 : i32
    scf.if %2 {
      %cst_15 = arith.constant 0.000000e+00 : f32
      %43 = vector.broadcast %cst_15 : f32 to vector<8x128xf32>
      %c0_16 = arith.constant 0 : index
      %c0_17 = arith.constant 0 : index
      %44 = vector.load %arg4[%c0_16, %c0_17] : memref<8x128xf32, #tpu.memory_space<vmem>>, vector<8x128xf32>
      tpu.vector_store %arg4[%c0_16, %c0_17], %43 {strides = array<i32>} : memref<8x128xf32, #tpu.memory_space<vmem>>, vector<8x128xf32>,
    } else {
    }
    %c0 = arith.constant 0 : index
    %c0_1 = arith.constant 0 : index
    %3 = vector.load %arg2[%c0, %c0_1] : memref<8x128xf32, #tpu.memory_space<vmem>>, vector<8x128xf32>
    %c0_2 = arith.constant 0 : index
    %c0_3 = arith.constant 0 : index
    %4 = vector.load %arg3[%c0_2, %c0_3] : memref<8x128xf32, #tpu.memory_space<vmem>>, vector<8x128xf32>
    %cst = arith.constant 2.000000e+00 : f32
    %5 = vector.broadcast %cst : f32 to vector<8x128xf32>
    %6 = arith.mulf %5, %4 : vector<8x128xf32>
    %cst_4 = arith.constant 1.000000e+00 : f32
    %7 = vector.broadcast %cst_4 : f32 to vector<8x128xf32>
    %8 = arith.subf %6, %7 : vector<8x128xf32>
    %9 = arith.mulf %8, %3 : vector<8x128xf32>
    %10 = math.absf %9 : vector<8x128xf32>
    %cst_5 = arith.constant 0.000000e+00 : f32
    %11 = vector.broadcast %cst_5 : f32 to vector<8x128xf32>
    %12 = arith.subf %11, %10 : vector<8x128xf32>
    %13 = math.exp %12 : vector<8x128xf32>
    %14 = math.log1p %13 : vector<8x128xf32>
    %cst_6 = arith.constant 0.000000e+00 : f32
    %15 = vector.broadcast %cst_6 : f32 to vector<8x128xf32>
    %16 = arith.minimumf %9, %15 : vector<8x128xf32>
    %17 = arith.subf %14, %16 : vector<8x128xf32>
    %cst_7 = arith.constant 1.000000e+00 : f32
    %18 = vector.broadcast %cst_7 : f32 to vector<8x128xf32>
    %19 = arith.addf %18, %13 : vector<8x128xf32>
    %20 = tpu.reciprocal %19 : vector<8x128xf32> -> vector<8x128xf32>
    %cst_8 = arith.constant 0.000000e+00 : f32
    %21 = vector.broadcast %cst_8 : f32 to vector<8x128xf32>
    %22 = arith.cmpf oge, %9, %21 : vector<8x128xf32>
    %cst_9 = arith.constant 1.000000e+00 : f32
    %23 = vector.broadcast %cst_9 : f32 to vector<8x128xf32>
    %24 = arith.select %22, %13, %23 : vector<8x128xi1>, vector<8x128xf32>
    %25 = arith.mulf %24, %20 : vector<8x128xf32>
    %cst_10 = arith.constant 5.000000e-01 : f32
    %26 = vector.broadcast %cst_10 : f32 to vector<8x128xf32>
    %27 = arith.mulf %26, %4 : vector<8x128xf32>
    %cst_11 = arith.constant 2.500000e-01 : f32
    %28 = vector.broadcast %cst_11 : f32 to vector<8x128xf32>
    %29 = arith.addf %28, %27 : vector<8x128xf32>
    %30 = arith.mulf %25, %25 : vector<8x128xf32>
    %31 = arith.mulf %29, %30 : vector<8x128xf32>
    %32 = arith.mulf %31, %17 : vector<8x128xf32>
    %c1_i32 = arith.constant 1 : i32
    %33 = arith.muli %arg0, %c1_i32 : i32
    %34 = arith.addi %33, %arg1 : i32
    %c8_i32 = arith.constant 8 : i32
    %35 = arith.muli %34, %c8_i32 : i32
    %c8_i32_12 = arith.constant 8 : i32
    %36 = arith.addi %35, %c8_i32_12 : i32
    %c16_i32 = arith.constant 16 : i32
    %37 = arith.cmpi sle, %36, %c16_i32 : i32
    %38 = arith.extui %37 : i1 to i32
    %c0_i32_13 = arith.constant 0 : i32
    %39 = arith.cmpi ne, %38, %c0_i32_13 : i32
    scf.if %39 {
      %43 = vector.shape_cast %32 : vector<8x128xf32> to vector<1x1x8x128xf32>
      %cst_15 = arith.constant dense<0.000000e+00> : vector<1x8x128xf32>
      %44 = vector.multi_reduction <add>, %43, %cst_15 [0] : vector<1x1x8x128xf32> to vector<1x8x128xf32>
      %c0_16 = arith.constant 0 : index
      %c0_17 = arith.constant 0 : index
      %45 = vector.load %arg4[%c0_16, %c0_17] : memref<8x128xf32, #tpu.memory_space<vmem>>, vector<8x128xf32>
      %cst_18 = arith.constant dense<0.000000e+00> : vector<8x128xf32>
      %46 = vector.multi_reduction <add>, %44, %cst_18 [0] : vector<1x8x128xf32> to vector<8x128xf32>
      %47 = arith.addf %45, %46 : vector<8x128xf32>
      %c0_19 = arith.constant 0 : index
      %c0_20 = arith.constant 0 : index
      %48 = vector.load %arg4[%c0_19, %c0_20] : memref<8x128xf32, #tpu.memory_space<vmem>>, vector<8x128xf32>
      tpu.vector_store %arg4[%c0_19, %c0_20], %47 {strides = array<i32>} : memref<8x128xf32, #tpu.memory_space<vmem>>, vector<8x128xf32>,
    } else {
    }
    %true = arith.constant true
    %40 = arith.xori %37, %true : i1
    %41 = arith.extui %40 : i1 to i32
    %c0_i32_14 = arith.constant 0 : i32
    %42 = arith.cmpi ne, %41, %c0_i32_14 : i32
    scf.if %42 {
      %43 = tpu.iota {dimensions = array<i32: 0>} : vector<8x128xi32>
      %44 = vector.broadcast %35 : i32 to vector<8x128xi32>
      %45 = arith.addi %43, %44 : vector<8x128xi32>
      %46 = tpu.iota {dimensions = array<i32: 1>} : vector<8x128xi32>
      %c16_i32_15 = arith.constant 16 : i32
      %47 = vector.broadcast %c16_i32_15 : i32 to vector<8x128xi32>
      %48 = arith.cmpi slt, %45, %47 : vector<8x128xi32>
      %c16_i32_16 = arith.constant 16 : i32
      %49 = vector.broadcast %c16_i32_16 : i32 to vector<8x128xi32>
      %50 = arith.cmpi eq, %45, %49 : vector<8x128xi32>
      %c0_i32_17 = arith.constant 0 : i32
      %51 = vector.broadcast %c0_i32_17 : i32 to vector<8x128xi32>
      %52 = arith.cmpi slt, %46, %51 : vector<8x128xi32>
      %53 = arith.andi %50, %52 : vector<8x128xi1>
      %54 = arith.ori %48, %53 : vector<8x128xi1>
      %cst_18 = arith.constant 0.000000e+00 : f32
      %55 = vector.broadcast %cst_18 : f32 to vector<8x128xf32>
      %56 = arith.select %54, %32, %55 : vector<8x128xi1>, vector<8x128xf32>
      %57 = vector.shape_cast %56 : vector<8x128xf32> to vector<1x1x8x128xf32>
      %cst_19 = arith.constant dense<0.000000e+00> : vector<1x8x128xf32>
      %58 = vector.multi_reduction <add>, %57, %cst_19 [0] : vector<1x1x8x128xf32> to vector<1x8x128xf32>
      %c0_20 = arith.constant 0 : index
      %c0_21 = arith.constant 0 : index
      %59 = vector.load %arg4[%c0_20, %c0_21] : memref<8x128xf32, #tpu.memory_space<vmem>>, vector<8x128xf32>
      %cst_22 = arith.constant dense<0.000000e+00> : vector<8x128xf32>
      %60 = vector.multi_reduction <add>, %58, %cst_22 [0] : vector<1x8x128xf32> to vector<8x128xf32>
      %61 = arith.addf %59, %60 : vector<8x128xf32>
      %c0_23 = arith.constant 0 : index
      %c0_24 = arith.constant 0 : index
      %62 = vector.load %arg4[%c0_23, %c0_24] : memref<8x128xf32, #tpu.memory_space<vmem>>, vector<8x128xf32>
      tpu.vector_store %arg4[%c0_23, %c0_24], %61 {strides = array<i32>} : memref<8x128xf32, #tpu.memory_space<vmem>>, vector<8x128xf32>,
    } else {
    }
    return
  }
  func.func @transform_0(%arg0: i32, %arg1: i32) -> (i32, i32) {
    %c1_i32 = arith.constant 1 : i32
    %0 = arith.muli %arg0, %c1_i32 : i32
    %1 = arith.addi %0, %arg1 : i32
    %c0_i32 = arith.constant 0 : i32
    %c0_i32_0 = arith.constant 0 : i32
    return %1, %c0_i32 : i32, i32
  }
  func.func @transform_1(%arg0: i32, %arg1: i32) -> (i32, i32) {
    %c1_i32 = arith.constant 1 : i32
    %0 = arith.muli %arg0, %c1_i32 : i32
    %1 = arith.addi %0, %arg1 : i32
    %c0_i32 = arith.constant 0 : i32
    %c0_i32_0 = arith.constant 0 : i32
    return %1, %c0_i32 : i32, i32
  }
  func.func @transform_2(%arg0: i32, %arg1: i32) -> (i32, i32) {
    %c0_i32 = arith.constant 0 : i32
    %c0_i32_0 = arith.constant 0 : i32
    return %arg0, %c0_i32 : i32, i32
  }
}

</mosaic_0001>

<llo_original>
// kernel: tpu_custom_call.1
$region0: #{tpu_custom_call.1}
  #allocation0 [shape = 'u32[]', space=smem, size = 0x4, offset = 0x4, fixed_abs, tag = 'smem constant byte address 0x4 - core index']
  #allocation1 [shape = 'u32[144,128]{1,0:T(1,128)}', space=vmem, size = 0x12000, scoped, tag = 'internal scratch']
  %s0 = inlined_call_operand.hbm [shape: f32[16,128], index: 0, kind: input, shape index: {}]
  %s1 = inlined_call_operand.hbm [shape: f32[16,128], index: 1, kind: input, shape index: {}]
  %s2 = inlined_call_operand.hbm [shape: f32[16,128], index: 2, kind: output, shape index: {}]
  %s3 = sld [smem:[#allocation0]]
  $region61: #{tpu_custom_call.1} parent=0
    _
  %s5 = ssub.s32 1, %s3
  %s6 = scalar_select 0, %s5, %s3
  $region1: #{tpu_custom_call.1} parent=0
    #allocation2 [shape = 'u8[8192]{0}', space=vmem, size = 0x2000, scoped, tag = 'input window, operand 0']
    #allocation3 [shape = 's32[2]{0}', space=sflag, size = 0x8, scoped, tag = 'scoped memory for tpu_custom_call.1']
    #allocation4 [shape = 's32[2]{0}', space=sflag, size = 0x8, scoped, tag = 'scoped memory for tpu_custom_call.1']
    #allocation5 [shape = 'u8[8192]{0}', space=vmem, size = 0x2000, scoped, tag = 'input window, operand 1']
    #allocation6 [shape = 's32[2]{0}', space=sflag, size = 0x8, scoped, tag = 'scoped memory for tpu_custom_call.1']
    #allocation7 [shape = 'u8[8192]{0}', space=vmem, size = 0x2000, scoped, tag = 'output window, operand 0']
    %7 = vsyncpa [#allocation3], 0
    %s8 = scalar_lea.sflag [#allocation3], 1
    %9 = vsyncpa %s8, 0
    %10 = vsyncpa [#allocation6], 0
    %s11 = scalar_lea.sflag [#allocation6], 1
    %12 = vsyncpa %s11, 0
    %13 = vsyncpa [#allocation4], 0
    %s14 = scalar_lea.sflag [#allocation4], 1
    %15 = vsyncpa %s14, 0
    loop: start=0, step=1, limit=4
    $region2: #{tpu_custom_call.1} parent=1 // loop_pre_header
      _
    $region3: #{tpu_custom_call.1} parent=1 // loop_header
      %s17 = sphi 0, %s21
      %p18 = scmp.ge.s32.totalorder %s17, 4
      %s24 = sphi 0, %s36
      %s25 = sphi 0, %s32
      %s26 = sphi 0, %s24
      %s27 = sphi 0, %s25
      %s28 = sphi 0, %s26
      %s29 = sphi 0, %s27
      %s41 = sphi 0, %s43
      %s44 = sphi 0, %s41
      %s45 = sphi 0, %s44
      %s61 = sphi 0, %s45
      %s69 = sphi 0, %s71
      %s72 = sphi 0, %s69
      %s73 = sphi 0, %s72
      %s89 = sphi 0, %s73
      %s95 = sphi 0, %s97
      %s98 = sphi 0, %s95
      %s99 = sphi 0, %s98
      %s115 = sphi 0, %s99
    $region4: #{tpu_custom_call.1} parent=1 // loop_header_branch
      %20 = sbr.rel (%p18) target = $region8
    $region5: #{tpu_custom_call.1} parent=1 // loop_body
      %s22 = ssub.s32 %s17, 1
      %s23 = ssub.s32 %s17, 2
      %s30 = sadd.s32 1, %s25
      %p31 = scmp.ge.s32.totalorder %s30, 1
      %s32 = scalar_select %p31, 0, %s30
      %s33 = sadd.s32 1, %s24
      %s34 = scalar_select %p31, %s33, %s24
      %p35 = scmp.ge.s32.totalorder %s34, 2
      %s36 = scalar_select %p35, 0, %s34
      %s37 = sadd.s32 %s24, %s25
      %s38 = sadd.s32 %s36, %s32
      %s39 = ssub.s32 %s37, %s38
      %p40 = scmp.eq.s32.totalorder %s39, 0
      %s42 = sadd.s32 %s41, 1
      %s43 = scalar_select %p40, %s41, %s42
      %p46 = pneg %p40
      %p47 = scmp.eq.s32.totalorder %s17, 1
      %p48 = por %p46, %p47
      %p49 = scmp.ne.s32.totalorder %s41, %s44
      %p50 = scmp.eq.s32.totalorder %s17, 0
      %p51 = por %p49, %p50
      %p52 = scmp.ne.s32.totalorder %s41, %s44
      %p53 = scmp.eq.s32.totalorder %s22, 1
      %p54 = por %p52, %p53
      %p55 = scmp.ne.s32.totalorder %s44, %s45
      %p56 = scmp.eq.s32.totalorder %s22, 0
      %p57 = por %p55, %p56
      %p58 = scmp.ne.s32.totalorder %s44, %s45
      %p59 = scmp.eq.s32.totalorder %s23, 1
      %p60 = por %p58, %p59
      %p62 = scmp.ne.s32.totalorder %s45, %s61
      %p63 = scmp.eq.s32.totalorder %s23, 0
      %p64 = por %p62, %p63
      %s65 = sadd.s32 %s24, %s25
      %s66 = sadd.s32 %s36, %s32
      %s67 = ssub.s32 %s65, %s66
      %p68 = scmp.eq.s32.totalorder %s67, 0
      %s70 = sadd.s32 %s69, 1
      %s71 = scalar_select %p68, %s69, %s70
      %p74 = pneg %p68
      %p75 = scmp.eq.s32.totalorder %s17, 1
      %p76 = por %p74, %p75
      %p77 = scmp.ne.s32.totalorder %s69, %s72
      %p78 = scmp.eq.s32.totalorder %s17, 0
      %p79 = por %p77, %p78
      %p80 = scmp.ne.s32.totalorder %s69, %s72
      %p81 = scmp.eq.s32.totalorder %s22, 1
      %p82 = por %p80, %p81
      %p83 = scmp.ne.s32.totalorder %s72, %s73
      %p84 = scmp.eq.s32.totalorder %s22, 0
      %p85 = por %p83, %p84
      %p86 = scmp.ne.s32.totalorder %s72, %s73
      %p87 = scmp.eq.s32.totalorder %s23, 1
      %p88 = por %p86, %p87
      %p90 = scmp.ne.s32.totalorder %s73, %s89
      %p91 = scmp.eq.s32.totalorder %s23, 0
      %p92 = por %p90, %p91
      %s93 = ssub.s32 %s24, %s36
      %p94 = scmp.eq.s32.totalorder %s93, 0
      %s96 = sadd.s32 %s95, 1
      %s97 = scalar_select %p94, %s95, %s96
      %p100 = pneg %p94
      %p101 = scmp.eq.s32.totalorder %s17, 1
      %p102 = por %p100, %p101
      %p103 = scmp.ne.s32.totalorder %s95, %s98
      %p104 = scmp.eq.s32.totalorder %s17, 0
      %p105 = por %p103, %p104
      %p106 = scmp.ne.s32.totalorder %s95, %s98
      %p107 = scmp.eq.s32.totalorder %s22, 1
      %p108 = por %p106, %p107
      %p109 = scmp.ne.s32.totalorder %s98, %s99
      %p110 = scmp.eq.s32.totalorder %s22, 0
      %p111 = por %p109, %p110
      %p112 = scmp.ne.s32.totalorder %s98, %s99
      %p113 = scmp.eq.s32.totalorder %s23, 1
      %p114 = por %p112, %p113
      %p116 = scmp.ne.s32.totalorder %s99, %s115
      %p117 = scmp.eq.s32.totalorder %s23, 0
      %p118 = por %p116, %p117
      %p119 = scmp.le.s32.totalorder 1, %s17
      %p120 = scmp.lt.s32.totalorder %s17, 3
      %p121 = pnand %p119, %p120
      %p122 = pneg %p121
      // Predicated region
      $region9: #{tpu_custom_call.1} parent=5 // pred_check
        _
      $region10: #{tpu_custom_call.1} parent=5 // pred_check_branch
        %124 = sbr.rel (%p121) target = $region12
      $region11: #{tpu_custom_call.1} parent=5 // pred_region
        %s125 = ssub.s32 %s17, 1
      $region12: #{tpu_custom_call.1} parent=5 // pred_fallthru
        _
      %p126 = scmp.lt.s32.totalorder %s17, 2
      // Predicated region
      $region13: #{tpu_custom_call.1} parent=5 // pred_check
        %p127 = pneg %p126
      $region14: #{tpu_custom_call.1} parent=5 // pred_check_branch
        %129 = sbr.rel (%p127) target = $region16
      $region15: #{tpu_custom_call.1} parent=5 // pred_region
        // Predicated region
        $region17: #{tpu_custom_call.1} parent=15 // pred_check
          %p130 = pneg %p51
        $region18: #{tpu_custom_call.1} parent=15 // pred_check_branch
          %132 = sbr.rel (%p130) target = $region20
        $region19: #{tpu_custom_call.1} parent=15 // pred_region
          %s133 = sand.u32 %s41, 1
          %s134 = scalar_lea.sflag [#allocation3], %s133
          %s135 = sand.u32 %s41, 1
          %s136 = smul.addr %s135, 8
          %s137 = scalar_lea.vmem [#allocation2], %s136
          %s138 = sadd.s32 %s24, %s25
          %s140 = ssub.s32 128, 128
          %141 = vsyncadd %s134, %s140
          %s142 = smul.addr %s138, 128
          %s143 = scalar_lea.hbm %s0, %s142
          %s145 = sshll.u32 %s137, 4
          %s146 = int_to_ptr.vmem [resolvable:$true] %s145
          %148 = dma.hbm_to_vmem [thread:$0]  %s143, 128, %s146, %s134
        $region20: #{tpu_custom_call.1} parent=15 // pred_fallthru
          _
        // Predicated region
        $region21: #{tpu_custom_call.1} parent=15 // pred_check
          %p149 = pneg %p79
        $region22: #{tpu_custom_call.1} parent=15 // pred_check_branch
          %151 = sbr.rel (%p149) target = $region24
        $region23: #{tpu_custom_call.1} parent=15 // pred_region
          %s152 = sand.u32 %s69, 1
          %s153 = scalar_lea.sflag [#allocation6], %s152
          %s154 = sand.u32 %s69, 1
          %s155 = smul.addr %s154, 8
          %s156 = scalar_lea.vmem [#allocation5], %s155
          %s157 = sadd.s32 %s24, %s25
          %s159 = ssub.s32 128, 128
          %160 = vsyncadd %s153, %s159
          %s161 = smul.addr %s157, 128
          %s162 = scalar_lea.hbm %s1, %s161
          %s164 = sshll.u32 %s156, 4
          %s165 = int_to_ptr.vmem [resolvable:$true] %s164
          %167 = dma.hbm_to_vmem [thread:$0]  %s162, 128, %s165, %s153
        $region24: #{tpu_custom_call.1} parent=15 // pred_fallthru
          _
      $region16: #{tpu_custom_call.1} parent=5 // pred_fallthru
        _
      %p168 = scmp.le.s32.totalorder 1, %s17
      %p169 = scmp.lt.s32.totalorder %s17, 3
      %p170 = pnand %p168, %p169
      %p171 = pneg %p170
      // Predicated region
      $region25: #{tpu_custom_call.1} parent=5 // pred_check
        _
      $region26: #{tpu_custom_call.1} parent=5 // pred_check_branch
        %173 = sbr.rel (%p170) target = $region28
      $region27: #{tpu_custom_call.1} parent=5 // pred_region
        %s174 = ssub.s32 %s17, 1
        %s175 = sand.u32 %s44, 1
        %s176 = scalar_lea.sflag [#allocation3], %s175
        %s177 = sand.u32 %s44, 1
        %s178 = smul.addr %s177, 8
        %s179 = scalar_lea.vmem [#allocation2], %s178
        // Predicated region
        $region29: #{tpu_custom_call.1} parent=27 // pred_check
          %p180 = pneg %p57
        $region30: #{tpu_custom_call.1} parent=27 // pred_check_branch
          %182 = sbr.rel (%p180) target = $region32
        $region31: #{tpu_custom_call.1} parent=27 // pred_region
          %183 = dma.done %s176, 128
        $region32: #{tpu_custom_call.1} parent=27 // pred_fallthru
          _
        %s184 = sand.u32 %s72, 1
        %s185 = scalar_lea.sflag [#allocation6], %s184
        %s186 = sand.u32 %s72, 1
        %s187 = smul.addr %s186, 8
        %s188 = scalar_lea.vmem [#allocation5], %s187
        // Predicated region
        $region33: #{tpu_custom_call.1} parent=27 // pred_check
          %p189 = pneg %p85
        $region34: #{tpu_custom_call.1} parent=27 // pred_check_branch
          %191 = sbr.rel (%p189) target = $region36
        $region35: #{tpu_custom_call.1} parent=27 // pred_region
          %192 = dma.done %s185, 128
        $region36: #{tpu_custom_call.1} parent=27 // pred_fallthru
          _
        %s193 = sand.u32 %s44, 1
        %s194 = scalar_lea.sflag [#allocation3], %s193
        %s195 = sand.u32 %s44, 1
        %s196 = smul.addr %s195, 8
        %s197 = scalar_lea.vmem [#allocation2], %s196
        %p198 = pneg %p57
        %p199 = pneg %p54
        %s200 = sand.u32 %s72, 1
        %s201 = scalar_lea.sflag [#allocation6], %s200
        %s202 = sand.u32 %s72, 1
        %s203 = smul.addr %s202, 8
        %s204 = scalar_lea.vmem [#allocation5], %s203
        %p205 = pneg %p85
        %p206 = pneg %p82
        %p207 = pneg %p111
        %p208 = pneg %p108
        %s209 = sand.u32 %s98, 1
        %s210 = scalar_lea.sflag [#allocation4], %s209
        %s211 = sand.u32 %s98, 1
        %s212 = smul.addr %s211, 8
        %s213 = scalar_lea.vmem [#allocation7], %s212
        %s214 = sadd.s32 %s26, %s27
        %s215 = sadd.s32 %s26, %s27
        %p216 = scmp.eq.s32.totalorder %s27, 0
        // Predicated region
        $region37: #{tpu_custom_call.1} parent=27 // pred_check
          %p217 = pneg %p216
        $region38: #{tpu_custom_call.1} parent=27 // pred_check_branch
          %219 = sbr.rel (%p217) target = $region40
        $region39: #{tpu_custom_call.1} parent=27 // pred_region
          %220 = vst [vmem:[%s213] sm:$0xff] 0.0
        $region40: #{tpu_custom_call.1} parent=27 // pred_fallthru
          _
        %v221 = vld [vmem:[%s179] sm:$0xff]
        %v222 = vld [vmem:[%s188] sm:$0xff]
        %v223 = vmul.f32 %v222, 2.0
        %v224 = vsub.f32 %v223, 1.0
        %v225 = vmul.f32 %v224, %v221
        %v226 = vand.u32 2147483647, %v225
        %v227 = vsub.f32 0.0, %v226
        %v228 = vmul.f32 %v227, 1.442695
        %v229 = vpow.pop %v228
        %v230 = vadd.f32 %v229, 1.0
        %v231 = vlog2.pop %v230
        %v232 = vmul.f32 %v231, 0.6931472
        %v233 = vmul.f32 -0.5, %v229
        %v234 = vadd.f32 %v233, 1.0
        %v235 = vmul.f32 %v234, %v229
        %v236 = vand.u32 2147483647, %v229
        %vm237 = vcmp.lt.f32.partialorder %v236, 0.0004427343
        %v238 = vsel %vm237, %v235, %v232
        %v239 = vmin.f32 %v225, 0.0
        %v240 = vsub.f32 %v238, %v239
        %v241 = vadd.f32 %v229, 1.0
        %v242 = vrcp.pop %v241
        %vm243 = vcmp.ge.f32.partialorder %v225, 0.0
        %v244 = vsel %vm243, %v229, 1.0
        %v245 = vmul.f32 %v244, %v242
        %v246 = vmul.f32 %v222, 0.5
        %v247 = vadd.f32 %v246, 0.25
        %v248 = vmul.f32 %v245, %v245
        %v249 = vmul.f32 %v247, %v248
        %v250 = vmul.f32 %v249, %v240
        %s251 = sadd.s32 %s26, %s27
        %s252 = smul.u32 %s251, 8
        %s253 = sadd.s32 %s252, 8
        %p254 = scmp.le.s32.totalorder %s253, 16
        // Predicated region
        $region41: #{tpu_custom_call.1} parent=27 // pred_check
          %p255 = pneg %p254
        $region42: #{tpu_custom_call.1} parent=27 // pred_check_branch
          %257 = sbr.rel (%p255) target = $region44
        $region43: #{tpu_custom_call.1} parent=27 // pred_region
          %v258 = vadd.f32 %v250, 0.0
          %v259 = vld [vmem:[%s213] sm:$0xff]
          %v260 = vadd.f32 %v258, 0.0
          %v261 = vadd.f32 %v259, %v260
          %262 = vst [vmem:[%s213] sm:$0xff] %v261
        $region44: #{tpu_custom_call.1} parent=27 // pred_fallthru
          _
        %p263 = scmp.gt.s32.totalorder %s253, 16
        // Predicated region
        $region45: #{tpu_custom_call.1} parent=27 // pred_check
          %p264 = pneg %p263
        $region46: #{tpu_custom_call.1} parent=27 // pred_check_branch
          %266 = sbr.rel (%p264) target = $region48
        $region47: #{tpu_custom_call.1} parent=27 // pred_region
          %v267 = vlaneseq
          %v268 = vshrl.u32 %v267, 7
          %v269 = vstv %s252
          %v270 = vadd.s32 %v268, %v269
          %v271 = vlaneseq
          %v272 = vand.u32 %v271, 127
          %vm273 = vcmp.lt.s32.totalorder %v270, 16
          %vm274 = vcmp.eq.s32.totalorder %v270, 16
          %vm275 = vcmp.lt.s32.totalorder %v272, 0
          %vm276 = vmand %vm274, %vm275
          %vm277 = vmor %vm273, %vm276
          %v278 = vsel %vm277, %v250, 0.0
          %v279 = vadd.f32 %v278, 0.0
          %v280 = vld [vmem:[%s213] sm:$0xff]
          %v281 = vadd.f32 %v279, 0.0
          %v282 = vadd.f32 %v280, %v281
          %283 = vst [vmem:[%s213] sm:$0xff] %v282
        $region48: #{tpu_custom_call.1} parent=27 // pred_fallthru
          _
        %s284 = sand.u32 %s98, 1
        %s285 = scalar_lea.sflag [#allocation4], %s284
        %s286 = sand.u32 %s98, 1
        %s287 = smul.addr %s286, 8
        %s288 = scalar_lea.vmem [#allocation7], %s287
        // Predicated region
        $region49: #{tpu_custom_call.1} parent=27 // pred_check
          %p289 = pneg %p108
        $region50: #{tpu_custom_call.1} parent=27 // pred_check_branch
          %291 = sbr.rel (%p289) target = $region52
        $region51: #{tpu_custom_call.1} parent=27 // pred_region
          %s293 = ssub.s32 128, 128
          %294 = vsyncadd %s285, %s293
          %s295 = smul.addr %s26, 128
          %s296 = scalar_lea.hbm %s2, %s295
          %s298 = sshll.u32 %s288, 4
          %s299 = int_to_ptr.vmem [resolvable:$true] %s298
          %301 = dma.vmem_to_hbm [thread:$0]  %s299, 128, %s296, %s285
        $region52: #{tpu_custom_call.1} parent=27 // pred_fallthru
          _
      $region28: #{tpu_custom_call.1} parent=5 // pred_fallthru
        _
      %p302 = scmp.le.s32.totalorder 2, %s17
      // Predicated region
      $region53: #{tpu_custom_call.1} parent=5 // pred_check
        %p303 = pneg %p302
      $region54: #{tpu_custom_call.1} parent=5 // pred_check_branch
        %305 = sbr.rel (%p303) target = $region56
      $region55: #{tpu_custom_call.1} parent=5 // pred_region
        %s306 = ssub.s32 %s17, 2
        // Predicated region
        $region57: #{tpu_custom_call.1} parent=55 // pred_check
          %p307 = pneg %p114
        $region58: #{tpu_custom_call.1} parent=55 // pred_check_branch
          %309 = sbr.rel (%p307) target = $region60
        $region59: #{tpu_custom_call.1} parent=55 // pred_region
          %s310 = sand.u32 %s99, 1
          %s311 = scalar_lea.sflag [#allocation4], %s310
          %s312 = sand.u32 %s99, 1
          %s313 = smul.addr %s312, 8
          %s314 = scalar_lea.vmem [#allocation7], %s313
          %315 = dma.done %s311, 128
        $region60: #{tpu_custom_call.1} parent=55 // pred_fallthru
          _
      $region56: #{tpu_custom_call.1} parent=5 // pred_fallthru
        _
    $region6: #{tpu_custom_call.1} parent=1 // loop_footer
      %s21 = sadd.s32 1, %s17
    $region7: #{tpu_custom_call.1} parent=1 // loop_footer_branch
      %16 = sbr.rel target = $region3
    $region8: #{tpu_custom_call.1} parent=1 // loop_exit
      _
    %316 = vsyncpa [#allocation3], 1
    %s317 = scalar_lea.sflag [#allocation3], 1
    %318 = vsyncpa %s317, 1
    %319 = vsyncpa [#allocation6], 1
    %s320 = scalar_lea.sflag [#allocation6], 1
    %321 = vsyncpa %s320, 1
    %322 = vsyncpa [#allocation4], 1
    %s323 = scalar_lea.sflag [#allocation4], 1
    %324 = vsyncpa %s323, 1

</llo_original>
